<compile_context>
chip_gen: v7x
topology: tpu7x:2x2x1
jax: 0.10.0
libtpu: 0.0.40
codegen_flags: <defaults>
</compile_context>

<pallas_src>
import jax
import jax.numpy as jnp
from jax.experimental import pallas as pl
from jax.experimental.pallas import tpu as pltpu


# Logical (torch) sizes and lane-padded kernel sizes.
H1_LOGICAL, H1_PAD = 400, 512   # fc1 output
H2_LOGICAL, H2_PAD = 300, 384   # fc2 output
IN_PACKED = 8                   # [x0..x3, u, 0, 0, 0]


def q_critic_kernel(xu_ref, w1_ref, b1_ref, w2h_ref, w2u_ref, b2_ref,
                    w3_ref, b3_ref, out_ref):
    xu = xu_ref[...]                       # (TM, 8)  packed [x | u | 0s]
    u = xu[:, 4:5]                         # (TM, 1)  action column

    # fc1 + relu : (TM, 8) @ (8, 512).  Rows 4..7 of w1 are zero, so the
    # packed u / padding columns contribute nothing; padded output lanes
    # stay exactly zero through relu.
    h1 = jnp.dot(xu, w1_ref[...], preferred_element_type=jnp.float32) + b1_ref[...]
    h1 = jnp.maximum(h1, 0.0)              # (TM, 512)

    # fc2 on cat([h1, u]) == h1 @ W2h + u * w2u_row, then + b2, relu.
    h2 = jnp.dot(h1, w2h_ref[...], preferred_element_type=jnp.float32)
    h2 = h2 + u * w2u_ref[...] + b2_ref[...]
    h2 = jnp.maximum(h2, 0.0)              # (TM, 384), padded lanes are zero

    # fc3 : degenerate N=1 matmul done on the VPU/XLU instead of the MXU.
    q = jnp.sum(h2 * w3_ref[...], axis=-1, keepdims=True) + b3_ref[...]
    out_ref[...] = q.astype(out_ref.dtype)


def q_critic_forward(x, u, packed_params, *, tm=512):
    """x: (B, 4) f32 state, u: (B, 1) f32 action -> (B, 1) f32 Q-value."""
    w1p, b1p, w2h, w2u, b2p, w3row, b3 = packed_params
    B = x.shape[0]

    # Tile size: multiple of 8 sublanes; don't over-pad tiny DDPG batches.
    tm = min(tm, max(8, pl.cdiv(B, 8) * 8))
    n_tiles = pl.cdiv(B, tm)
    b_pad = n_tiles * tm

    # Pack state + action into one lane-dense (B_pad, 8) operand.
    xu = jnp.zeros((b_pad, IN_PACKED), jnp.float32)
    xu = xu.at[:B, 0:4].set(x.astype(jnp.float32))
    xu = xu.at[:B, 4:5].set(u.astype(jnp.float32))

    const = lambda i: (0, 0)   # weights: same (full) block every grid step

    out = pl.pallas_call(
        q_critic_kernel,
        out_shape=jax.ShapeDtypeStruct((b_pad, 1), jnp.float32),
        grid=(n_tiles,),
        in_specs=[
            pl.BlockSpec((tm, IN_PACKED), lambda i: (i, 0)),   # packed x|u tile
            pl.BlockSpec((IN_PACKED, H1_PAD), const),          # w1
            pl.BlockSpec((1, H1_PAD), const),                  # b1
            pl.BlockSpec((H1_PAD, H2_PAD), const),             # w2 (state part)
            pl.BlockSpec((1, H2_PAD), const),                  # w2 (action row)
            pl.BlockSpec((1, H2_PAD), const),                  # b2
            pl.BlockSpec((1, H2_PAD), const),                  # w3 as a row
            pl.BlockSpec((1, 1), const),                       # b3
        ],
        out_specs=pl.BlockSpec((tm, 1), lambda i: (i, 0)),
        compiler_params=pltpu.CompilerParams(
            dimension_semantics=("parallel",),   # shard batch across TCs (v7x)
        ),
    )(xu, w1p, b1p, w2h, w2u, b2p, w3row, b3)

    return out[:B]


def init_params(key):
    """Torch-Linear-style U(-1/sqrt(fan_in), +...) init, plus lane-padded packing."""
    keys = jax.random.split(key, 6)

    def uinit(k, shape, fan_in):
        bound = 1.0 / (fan_in ** 0.5)
        return jax.random.uniform(k, shape, jnp.float32, -bound, bound)

    # Logical (torch-equivalent) parameters, stored (in, out).
    w1 = uinit(keys[0], (4, H1_LOGICAL), 4)
    b1 = uinit(keys[1], (1, H1_LOGICAL), 4)
    w2 = uinit(keys[2], (401, H2_LOGICAL), 401)
    b2 = uinit(keys[3], (1, H2_LOGICAL), 401)
    w3 = uinit(keys[4], (H2_LOGICAL, 1), H2_LOGICAL)
    b3 = uinit(keys[5], (1, 1), H2_LOGICAL)

    # Zero-padded / repacked parameters for the kernel.  All padding is zero,
    # so padded lanes stay zero through relu and contribute 0 downstream.
    w1p = jnp.zeros((IN_PACKED, H1_PAD), jnp.float32).at[0:4, 0:H1_LOGICAL].set(w1)
    b1p = jnp.zeros((1, H1_PAD), jnp.float32).at[:, 0:H1_LOGICAL].set(b1)
    w2h = jnp.zeros((H1_PAD, H2_PAD), jnp.float32).at[0:H1_LOGICAL, 0:H2_LOGICAL].set(w2[:H1_LOGICAL, :])
    w2u = jnp.zeros((1, H2_PAD), jnp.float32).at[:, 0:H2_LOGICAL].set(w2[H1_LOGICAL:, :])
    b2p = jnp.zeros((1, H2_PAD), jnp.float32).at[:, 0:H2_LOGICAL].set(b2)
    w3row = jnp.zeros((1, H2_PAD), jnp.float32).at[:, 0:H2_LOGICAL].set(w3.T)

    packed = (w1p, b1p, w2h, w2u, b2p, w3row, b3)
    logical = (w1, b1, w2, b2, w3, b3)
    return packed, logical


if __name__ == "__main__":
    key = jax.random.PRNGKey(0)
    pkey, xkey, ukey = jax.random.split(key, 3)

    B = 2
    packed_params, logical_params = init_params(pkey)
    x = jax.random.normal(xkey, (B, 4), jnp.float32)   # state
    u = jax.random.normal(ukey, (B, 1), jnp.float32)   # action

    out = q_critic_forward(x, u, packed_params)
    out = jax.block_until_ready(out)

    # Pure-JAX reference using the explicit concat, exactly like torch.
    w1, b1, w2, b2, w3, b3 = logical_params
    h1 = jnp.maximum(x @ w1 + b1, 0.0)
    h2 = jnp.maximum(jnp.concatenate([h1, u], axis=1) @ w2 + b2, 0.0)
    ref = h2 @ w3 + b3

    assert out.shape == (B, 1)
    assert jnp.allclose(out, ref, atol=1e-5, rtol=1e-5)

    print("KERNEL_OK")
</pallas_src>

<mosaic_0001>
module attributes {stable_mosaic.version = 11 : i64} {
  func.func @q_critic_kernel(%arg0: i32, %arg1: memref<8x8xf32, #tpu.memory_space<vmem>>, %arg2: memref<8x512xf32, #tpu.memory_space<vmem>>, %arg3: memref<1x512xf32, #tpu.memory_space<vmem>>, %arg4: memref<512x384xf32, #tpu.memory_space<vmem>>, %arg5: memref<1x384xf32, #tpu.memory_space<vmem>>, %arg6: memref<1x384xf32, #tpu.memory_space<vmem>>, %arg7: memref<1x384xf32, #tpu.memory_space<vmem>>, %arg8: memref<1x1xf32, #tpu.memory_space<vmem>>, %arg9: memref<8x1xf32, #tpu.memory_space<vmem>>) attributes {dimension_semantics = [#tpu.dimension_semantics<parallel>], iteration_bounds = array<i64: 1>, scalar_prefetch = 0 : i64, scratch_operands = 0 : i64, tpu.core_type = #tpu.core_type<tc>, window_params = [{transform_indices = @transform_0, window_bounds = array<i64: 8, 8>}, {pipeline_mode = #tpu.pipeline_mode<synchronous>, transform_indices = @transform_1, window_bounds = array<i64: 8, 512>}, {pipeline_mode = #tpu.pipeline_mode<synchronous>, transform_indices = @transform_2, window_bounds = array<i64: 1, 512>}, {pipeline_mode = #tpu.pipeline_mode<synchronous>, transform_indices = @transform_3, window_bounds = array<i64: 512, 384>}, {pipeline_mode = #tpu.pipeline_mode<synchronous>, transform_indices = @transform_4, window_bounds = array<i64: 1, 384>}, {pipeline_mode = #tpu.pipeline_mode<synchronous>, transform_indices = @transform_5, window_bounds = array<i64: 1, 384>}, {pipeline_mode = #tpu.pipeline_mode<synchronous>, transform_indices = @transform_6, window_bounds = array<i64: 1, 384>}, {pipeline_mode = #tpu.pipeline_mode<synchronous>, transform_indices = @transform_7, window_bounds = array<i64: 1, 1>}, {transform_indices = @transform_8, window_bounds = array<i64: 8, 1>}]} {
    %c0 = arith.constant 0 : index
    %c0_0 = arith.constant 0 : index
    %0 = vector.load %arg1[%c0, %c0_0] : memref<8x8xf32, #tpu.memory_space<vmem>>, vector<8x8xf32>
    %1 = vector.extract_strided_slice %0 {offsets = [0, 4], sizes = [8, 1], strides = [1, 1]} : vector<8x8xf32> to vector<8x1xf32>
    %c0_1 = arith.constant 0 : index
    %c0_2 = arith.constant 0 : index
    %2 = vector.load %arg2[%c0_1, %c0_2] : memref<8x512xf32, #tpu.memory_space<vmem>>, vector<8x512xf32>
    %cst = arith.constant dense<0.000000e+00> : vector<8x512xf32>
    %3 = tpu.matmul %0, %2, %cst {dimension_numbers = #tpu.dot_dimension_numbers<[1], [0], [0], [1], [0, 0, 1, 1], [], []>} : vector<8x8xf32>, vector<8x512xf32>, vector<8x512xf32> -> vector<8x512xf32>
    %c0_3 = arith.constant 0 : index
    %c0_4 = arith.constant 0 : index
    %4 = vector.load %arg3[%c0_3, %c0_4] : memref<1x512xf32, #tpu.memory_space<vmem>>, vector<1x512xf32>
    %5 = vector.broadcast %4 : vector<1x512xf32> to vector<8x512xf32>
    %6 = arith.addf %3, %5 : vector<8x512xf32>
    %cst_5 = arith.constant 0.000000e+00 : f32
    %7 = vector.broadcast %cst_5 : f32 to vector<8x512xf32>
    %8 = arith.maximumf %6, %7 : vector<8x512xf32>
    %c0_6 = arith.constant 0 : index
    %c0_7 = arith.constant 0 : index
    %9 = vector.load %arg4[%c0_6, %c0_7] : memref<512x384xf32, #tpu.memory_space<vmem>>, vector<512x384xf32>
    %cst_8 = arith.constant dense<0.000000e+00> : vector<8x384xf32>
    %10 = tpu.matmul %8, %9, %cst_8 {dimension_numbers = #tpu.dot_dimension_numbers<[1], [0], [0], [1], [0, 0, 1, 1], [], []>} : vector<8x512xf32>, vector<512x384xf32>, vector<8x384xf32> -> vector<8x384xf32>
    %c0_9 = arith.constant 0 : index
    %c0_10 = arith.constant 0 : index
    %11 = vector.load %arg5[%c0_9, %c0_10] : memref<1x384xf32, #tpu.memory_space<vmem>>, vector<1x384xf32>
    %12 = vector.broadcast %1 : vector<8x1xf32> to vector<8x384xf32>
    %13 = vector.broadcast %11 : vector<1x384xf32> to vector<8x384xf32>
    %14 = arith.mulf %12, %13 : vector<8x384xf32>
    %15 = arith.addf %10, %14 : vector<8x384xf32>
    %c0_11 = arith.constant 0 : index
    %c0_12 = arith.constant 0 : index
    %16 = vector.load %arg6[%c0_11, %c0_12] : memref<1x384xf32, #tpu.memory_space<vmem>>, vector<1x384xf32>
    %17 = vector.broadcast %16 : vector<1x384xf32> to vector<8x384xf32>
    %18 = arith.addf %15, %17 : vector<8x384xf32>
    %cst_13 = arith.constant 0.000000e+00 : f32
    %19 = vector.broadcast %cst_13 : f32 to vector<8x384xf32>
    %20 = arith.maximumf %18, %19 : vector<8x384xf32>
    %c0_14 = arith.constant 0 : index
    %c0_15 = arith.constant 0 : index
    %21 = vector.load %arg7[%c0_14, %c0_15] : memref<1x384xf32, #tpu.memory_space<vmem>>, vector<1x384xf32>
    %22 = vector.broadcast %21 : vector<1x384xf32> to vector<8x384xf32>
    %23 = arith.mulf %20, %22 : vector<8x384xf32>
    %cst_16 = arith.constant dense<0.000000e+00> : vector<8xf32>
    %24 = vector.multi_reduction <add>, %23, %cst_16 [1] : vector<8x384xf32> to vector<8xf32>
    %25 = vector.shape_cast %24 : vector<8xf32> to vector<8x1xf32>
    %c0_17 = arith.constant 0 : index
    %c0_18 = arith.constant 0 : index
    %26 = vector.load %arg8[%c0_17, %c0_18] : memref<1x1xf32, #tpu.memory_space<vmem>>, vector<1x1xf32>
    %27 = vector.broadcast %26 : vector<1x1xf32> to vector<8x1xf32>
    %28 = arith.addf %25, %27 : vector<8x1xf32>
    %c0_19 = arith.constant 0 : index
    %c0_20 = arith.constant 0 : index
    %29 = vector.load %arg9[%c0_19, %c0_20] : memref<8x1xf32, #tpu.memory_space<vmem>>, vector<8x1xf32>
    tpu.vector_store %arg9[%c0_19, %c0_20], %28 {strides = array<i32>} : memref<8x1xf32, #tpu.memory_space<vmem>>, vector<8x1xf32>,
    return
  }
  func.func @transform_0(%arg0: i32) -> (i32, i32) {
    %c0_i32 = arith.constant 0 : i32
    %c0_i32_0 = arith.constant 0 : i32
    return %arg0, %c0_i32 : i32, i32
  }
  func.func @transform_1(%arg0: i32) -> (i32, i32) {
    %c0_i32 = arith.constant 0 : i32
    %c0_i32_0 = arith.constant 0 : i32
    %c0_i32_1 = arith.constant 0 : i32
    return %c0_i32, %c0_i32_0 : i32, i32
  }
  func.func @transform_2(%arg0: i32) -> (i32, i32) {
    %c0_i32 = arith.constant 0 : i32
    %c0_i32_0 = arith.constant 0 : i32
    %c0_i32_1 = arith.constant 0 : i32
    return %c0_i32, %c0_i32_0 : i32, i32
  }
  func.func @transform_3(%arg0: i32) -> (i32, i32) {
    %c0_i32 = arith.constant 0 : i32
    %c0_i32_0 = arith.constant 0 : i32
    %c0_i32_1 = arith.constant 0 : i32
    return %c0_i32, %c0_i32_0 : i32, i32
  }
  func.func @transform_4(%arg0: i32) -> (i32, i32) {
    %c0_i32 = arith.constant 0 : i32
    %c0_i32_0 = arith.constant 0 : i32
    %c0_i32_1 = arith.constant 0 : i32
    return %c0_i32, %c0_i32_0 : i32, i32
  }
  func.func @transform_5(%arg0: i32) -> (i32, i32) {
    %c0_i32 = arith.constant 0 : i32
    %c0_i32_0 = arith.constant 0 : i32
    %c0_i32_1 = arith.constant 0 : i32
    return %c0_i32, %c0_i32_0 : i32, i32
  }
  func.func @transform_6(%arg0: i32) -> (i32, i32) {
    %c0_i32 = arith.constant 0 : i32
    %c0_i32_0 = arith.constant 0 : i32
    %c0_i32_1 = arith.constant 0 : i32
    return %c0_i32, %c0_i32_0 : i32, i32
  }
  func.func @transform_7(%arg0: i32) -> (i32, i32) {
    %c0_i32 = arith.constant 0 : i32
    %c0_i32_0 = arith.constant 0 : i32
    %c0_i32_1 = arith.constant 0 : i32
    return %c0_i32, %c0_i32_0 : i32, i32
  }
  func.func @transform_8(%arg0: i32) -> (i32, i32) {
    %c0_i32 = arith.constant 0 : i32
    %c0_i32_0 = arith.constant 0 : i32
    return %arg0, %c0_i32 : i32, i32
  }
}

</mosaic_0001>

<llo_original>
// kernel: tpu_custom_call.1
$region0: #{tpu_custom_call.1}
  #allocation0 [shape = 'u32[]', space=smem, size = 0x4, offset = 0x4, fixed_abs, tag = 'smem constant byte address 0x4 - core index']
  #allocation1 [shape = 'u32[144,128]{1,0:T(1,128)}', space=vmem, size = 0x12000, scoped, tag = 'internal scratch']
  #allocation2 [shape = 'f32[1,1]{1,0:T(1,128)S(1)}', space=vmem, size = 0x200, scoped, tag = 'scoped memory for tpu_custom_call.1']
  %s0 = inlined_call_operand.hbm [shape: f32[8,8], index: 0, kind: input, shape index: {}]
  %s1 = inlined_call_operand.hbm [shape: f32[8,512], index: 1, kind: input, shape index: {}]
  %s2 = inlined_call_operand.vmem [shape: f32[1,512], index: 2, kind: input, shape index: {}]
  %s3 = inlined_call_operand.hbm [shape: f32[512,384], index: 3, kind: input, shape index: {}]
  %s4 = inlined_call_operand.vmem [shape: f32[1,384], index: 4, kind: input, shape index: {}]
  %s5 = inlined_call_operand.vmem [shape: f32[1,384], index: 5, kind: input, shape index: {}]
  %s6 = inlined_call_operand.vmem [shape: f32[1,384], index: 6, kind: input, shape index: {}]
  %s7 = inlined_call_operand.<no memory space> [shape: f32[1,1], index: 7, kind: input, shape index: {}]
  %s8 = inlined_call_operand.vmem [shape: f32[8,1], index: 8, kind: output, shape index: {}]
  %s9 = sld [smem:[#allocation0]]
  $region54: #{tpu_custom_call.1} parent=0
    _
  %s11 = ssub.s32 1, %s9
  %s12 = scalar_select 0, %s11, %s9
  %v13 = vstv %s7
  %14 = vst [vmem:[#allocation2] sm:$0x1] %v13
  $region1: #{tpu_custom_call.1} parent=0
    #allocation3 [shape = 'u8[4096]{0}', space=vmem, size = 0x1000, scoped, tag = 'input window, operand 0, single buffered']
    #allocation4 [shape = 's32[1]{0}', space=sflag, size = 0x4, scoped, tag = 'scoped memory for tpu_custom_call.1']
    #allocation5 [shape = 'u8[16384]{0}', space=vmem, size = 0x4000, scoped, tag = 'input window, operand 1, single buffered']
    #allocation6 [shape = 's32[1]{0}', space=sflag, size = 0x4, scoped, tag = 'scoped memory for tpu_custom_call.1']
    #allocation7 [shape = 'u8[786432]{0}', space=vmem, size = 0xc0000, scoped, tag = 'input window, operand 3, single buffered']
    %15 = vsyncpa [#allocation4], 0
    %16 = vsyncpa [#allocation6], 0
    // Predicated region
    $region2: #{tpu_custom_call.1} parent=1 // pred_check
      _
    $region3: #{tpu_custom_call.1} parent=1 // pred_check_branch
      %18 = sbr.rel (0) target = $region5
    $region4: #{tpu_custom_call.1} parent=1 // pred_region
      %s20 = ssub.s32 128, 128
      %21 = vsyncadd [#allocation4], %s20
      %s23 = sshll.u32 [#allocation3], 4
      %s24 = int_to_ptr.vmem [resolvable:$true] %s23
      %26 = dma.hbm_to_vmem [thread:$0]  %s0, 128, %s24, [#allocation4]
    $region5: #{tpu_custom_call.1} parent=1 // pred_fallthru
      _
    // Predicated region
    $region6: #{tpu_custom_call.1} parent=1 // pred_check
      _
    $region7: #{tpu_custom_call.1} parent=1 // pred_check_branch
      %28 = sbr.rel (0) target = $region9
    $region8: #{tpu_custom_call.1} parent=1 // pred_region
      %s30 = ssub.s32 512, 512
      %31 = vsyncadd [#allocation6], %s30
      %s33 = sshll.u32 [#allocation5], 4
      %s34 = int_to_ptr.vmem [resolvable:$true] %s33
      %36 = dma.hbm_to_vmem [thread:$0]  %s1, 512, %s34, [#allocation6]
    $region9: #{tpu_custom_call.1} parent=1 // pred_fallthru
      _
    // Predicated region
    $region10: #{tpu_custom_call.1} parent=1 // pred_check
      _
    $region11: #{tpu_custom_call.1} parent=1 // pred_check_branch
      %38 = sbr.rel (0) target = $region13
    $region12: #{tpu_custom_call.1} parent=1 // pred_region
      _
    $region13: #{tpu_custom_call.1} parent=1 // pred_fallthru
      _
    // Predicated region
    $region14: #{tpu_custom_call.1} parent=1 // pred_check
      _
    $region15: #{tpu_custom_call.1} parent=1 // pred_check_branch
      %40 = sbr.rel (0) target = $region17
    $region16: #{tpu_custom_call.1} parent=1 // pred_region
      %s42 = ssub.s32 24576, 24576
      %43 = vsyncadd [#allocation6], %s42
      %s44 = sshll.u32 [#allocation7], 4
      %s45 = int_to_ptr.vmem [resolvable:$true] %s44
      %50 = dma.hbm_to_vmem [thread:$0]  %s3, 24576, %s45, [#allocation6], 384, 384, 24
    $region17: #{tpu_custom_call.1} parent=1 // pred_fallthru
      _
    // Predicated region
    $region18: #{tpu_custom_call.1} parent=1 // pred_check
      _
    $region19: #{tpu_custom_call.1} parent=1 // pred_check_branch
      %52 = sbr.rel (0) target = $region21
    $region20: #{tpu_custom_call.1} parent=1 // pred_region
      _
    $region21: #{tpu_custom_call.1} parent=1 // pred_fallthru
      _
    // Predicated region
    $region22: #{tpu_custom_call.1} parent=1 // pred_check
      _
    $region23: #{tpu_custom_call.1} parent=1 // pred_check_branch
      %54 = sbr.rel (0) target = $region25
    $region24: #{tpu_custom_call.1} parent=1 // pred_region
      _
    $region25: #{tpu_custom_call.1} parent=1 // pred_fallthru
      _
    // Predicated region
    $region26: #{tpu_custom_call.1} parent=1 // pred_check
      _
    $region27: #{tpu_custom_call.1} parent=1 // pred_check_branch
      %56 = sbr.rel (0) target = $region29
    $region28: #{tpu_custom_call.1} parent=1 // pred_region
      _
    $region29: #{tpu_custom_call.1} parent=1 // pred_fallthru
      _
    // Predicated region
    $region30: #{tpu_custom_call.1} parent=1 // pred_check
      _
    $region31: #{tpu_custom_call.1} parent=1 // pred_check_branch
      %58 = sbr.rel (0) target = $region33
    $region32: #{tpu_custom_call.1} parent=1 // pred_region
      _
    $region33: #{tpu_custom_call.1} parent=1 // pred_fallthru
      _
    // Predicated region
    $region34: #{tpu_custom_call.1} parent=1 // pred_check
      _
    $region35: #{tpu_custom_call.1} parent=1 // pred_check_branch
      %60 = sbr.rel (0) target = $region37
    $region36: #{tpu_custom_call.1} parent=1 // pred_region
      %61 = dma.done [#allocation4], 128
    $region37: #{tpu_custom_call.1} parent=1 // pred_fallthru
      _
    // Predicated region
    $region38: #{tpu_custom_call.1} parent=1 // pred_check
      _
    $region39: #{tpu_custom_call.1} parent=1 // pred_check_branch
      %63 = sbr.rel (0) target = $region41
    $region40: #{tpu_custom_call.1} parent=1 // pred_region
      %64 = dma.done [#allocation6], 512
    $region41: #{tpu_custom_call.1} parent=1 // pred_fallthru
      _
    // Predicated region
    $region42: #{tpu_custom_call.1} parent=1 // pred_check
      _
    $region43: #{tpu_custom_call.1} parent=1 // pred_check_branch
      %66 = sbr.rel (0) target = $region45
    $region44: #{tpu_custom_call.1} parent=1 // pred_region
      %67 = dma.done [#allocation6], 24576
    $region45: #{tpu_custom_call.1} parent=1 // pred_fallthru
      _
    %v68 = vld [vmem:[#allocation3] sm:$0xff]
    %v69 = vld [vmem:[#allocation5] sm:$0xff]
    %v70 = vld [vmem:[#allocation5 + $0x8] sm:$0xff]
    %v71 = vld [vmem:[#allocation5 + $0x10] sm:$0xff]
    %v72 = vld [vmem:[#allocation5 + $0x18] sm:$0xff]
    %v73 = vld [vmem:[%s2] sm:$0xf]
    %v75 = vlaneseq
    %v76 = vshrl.u32 %v75, 7
    %v77 = vsub.s32 0, %v76
    %v78 = vrot.slane %v73, %v77
    %v79 = vlaneseq
    %v80 = vshrl.u32 %v79, 7
    %v81 = vsub.s32 1, %v80
    %v82 = vrot.slane %v73, %v81
    %v83 = vlaneseq
    %v84 = vshrl.u32 %v83, 7
    %v85 = vsub.s32 2, %v84
    %v86 = vrot.slane %v73, %v85
    %v87 = vlaneseq
    %v88 = vshrl.u32 %v87, 7
    %v89 = vsub.s32 3, %v88
    %v90 = vrot.slane %v73, %v89
    %vm95 = vcmask 64512
    %v97 = vsel %vm95, %v68, 0
    %99 = vmatprep.subr.mxu0 %v70
    %100 = vmatpush1.msra.mxu0 %v69
    %101 = vmatprep.subr.mxu0 0.0
    %102 = vmatpush1.msra.mxu0 0.0
    %103 = vmatprep.subr.mxu0 0.0
    %104 = vmatpush1.msra.mxu0 0.0
    %105 = vmatprep.subr.mxu0 0.0
    %106 = vmatpush1.msra.mxu0 0.0
    %107 = vmatprep.subr.mxu0 0.0
    %108 = vmatpush1.msra.mxu0 0.0
    %109 = vmatprep.subr.mxu0 0.0
    %110 = vmatpush1.msra.mxu0 0.0
    %111 = vmatprep.subr.mxu0 0.0
    %112 = vmatpush1.msra.mxu0 0.0
    %113 = vmatprep.subr.mxu0 0.0
    %114 = vmatpush1.msra.mxu0 0.0
    %115 = vmatprep.subr.mxu0 0.0
    %116 = vmatpush1.msra.mxu0 0.0
    %117 = vmatprep.subr.mxu0 0.0
    %118 = vmatpush1.msra.mxu0 0.0
    %119 = vmatprep.subr.mxu0 0.0
    %120 = vmatpush1.msra.mxu0 0.0
    %121 = vmatprep.subr.mxu0 0.0
    %122 = vmatpush1.msra.mxu0 0.0
    %123 = vmatprep.subr.mxu0 0.0
    %124 = vmatpush1.msra.mxu0 0.0
    %125 = vmatprep.subr.mxu0 0.0
    %126 = vmatpush1.msra.mxu0 0.0
    %127 = vmatprep.subr.mxu0 0.0
    %128 = vmatpush1.msra.mxu0 0.0
    %129 = vmatprep.subr.mxu0 0.0
    %130 = vmatpush1.msra.mxu0 0.0
    %131 = vmatprep.subr.mxu0 0.0
    %132 = vmatpush1.msra.mxu0 0.0
    %133 = vmatprep.subr.mxu0 0.0
    %134 = vmatpush1.msra.mxu0 0.0
    %135 = vmatprep.subr.mxu0 0.0
    %136 = vmatpush1.msra.mxu0 0.0
    %137 = vmatprep.subr.mxu0 0.0
    %138 = vmatpush1.msra.mxu0 0.0
    %139 = vmatprep.subr.mxu0 0.0
    %140 = vmatpush1.msra.mxu0 0.0
    %141 = vmatprep.subr.mxu0 0.0
    %142 = vmatpush1.msra.mxu0 0.0
    %143 = vmatprep.subr.mxu0 0.0
    %144 = vmatpush1.msra.mxu0 0.0
    %145 = vmatprep.subr.mxu0 0.0
    %146 = vmatpush1.msra.mxu0 0.0
    %147 = vmatprep.subr.mxu0 0.0
    %148 = vmatpush1.msra.mxu0 0.0
    %149 = vmatprep.subr.mxu0 0.0
    %150 = vmatpush1.msra.mxu0 0.0
    %151 = vmatprep.subr.mxu0 0.0
    %152 = vmatpush1.msra.mxu0 0.0
    %153 = vmatprep.subr.mxu0 0.0
    %154 = vmatpush1.msra.mxu0 0.0
    %155 = vmatprep.subr.mxu0 0.0
    %156 = vmatpush1.msra.mxu0 0.0
    %157 = vmatprep.subr.mxu0 0.0
    %158 = vmatpush1.msra.mxu0 0.0
    %159 = vmatprep.subr.mxu0 0.0
    %160 = vmatpush1.msra.mxu0 0.0
    %161 = vmatprep.subr.mxu0 0.0
    %162 = vmatpush1.msra.mxu0 0.0
    %163 = vmatprep.mubr.f32.mxu0 0.0
    %164 = vmatmul.mubr.f32.gmra.mrb[0].mxu0 %v97
    %v165 = vpop.f32.mrb[0].mxu0
    %v166 = vadd.f32 %v78, %v165
    %v167 = vpop.f32.mrb[0].mxu0
    %v168 = vadd.f32 %v82, %v167
    %169 = vdwg.mxu0
    %170 = vmatprep.subr.mxu0 %v72
    %171 = vmatpush1.msra.mxu0 %v71
    %172 = vmatprep.subr.mxu0 0.0
    %173 = vmatpush1.msra.mxu0 0.0
    %174 = vmatprep.subr.mxu0 0.0
    %175 = vmatpush1.msra.mxu0 0.0
    %176 = vmatprep.subr.mxu0 0.0
    %177 = vmatpush1.msra.mxu0 0.0
    %178 = vmatprep.subr.mxu0 0.0
    %179 = vmatpush1.msra.mxu0 0.0
    %180 = vmatprep.subr.mxu0 0.0
    %181 = vmatpush1.msra.mxu0 0.0
    %182 = vmatprep.subr.mxu0 0.0
    %183 = vmatpush1.msra.mxu0 0.0
    %184 = vmatprep.subr.mxu0 0.0
    %185 = vmatpush1.msra.mxu0 0.0
    %186 = vmatprep.subr.mxu0 0.0
    %187 = vmatpush1.msra.mxu0 0.0
    %188 = vmatprep.subr.mxu0 0.0
    %189 = vmatpush1.msra.mxu0 0.0
    %190 = vmatprep.subr.mxu0 0.0
    %191 = vmatpush1.msra.mxu0 0.0
    %192 = vmatprep.subr.mxu0 0.0
    %193 = vmatpush1.msra.mxu0 0.0
    %194 = vmatprep.subr.mxu0 0.0
    %195 = vmatpush1.msra.mxu0 0.0
    %196 = vmatprep.subr.mxu0 0.0
    %197 = vmatpush1.msra.mxu0 0.0
    %198 = vmatprep.subr.mxu0 0.0
    %199 = vmatpush1.msra.mxu0 0.0
    %200 = vmatprep.subr.mxu0 0.0
    %201 = vmatpush1.msra.mxu0 0.0
    %202 = vmatprep.subr.mxu0 0.0
    %203 = vmatpush1.msra.mxu0 0.0
    %204 = vmatprep.subr.mxu0 0.0
    %205 = vmatpush1.msra.mxu0 0.0
    %206 = vmatprep.subr.mxu0 0.0
    %207 = vmatpush1.msra.mxu0 0.0
    %208 = vmatprep.subr.mxu0 0.0
    %209 = vmatpush1.msra.mxu0 0.0
    %210 = vmatprep.subr.mxu0 0.0
    %211 = vmatpush1.msra.mxu0 0.0
    %212 = vmatprep.subr.mxu0 0.0
    %213 = vmatpush1.msra.mxu0 0.0
    %214 = vmatprep.subr.mxu0 0.0
    %215 = vmatpush1.msra.mxu0 0.0
    %216 = vmatprep.subr.mxu0 0.0
    %217 = vmatpush1.msra.mxu0 0.0
    %218 = vmatprep.subr.mxu0 0.0
    %219 = vmatpush1.msra.mxu0 0.0
    %220 = vmatprep.subr.mxu0 0.0
    %221 = vmatpush1.msra.mxu0 0.0
    %222 = vmatprep.subr.mxu0 0.0
    %223 = vmatpush1.msra.mxu0 0.0
    %224 = vmatprep.subr.mxu0 0.0
    %225 = vmatpush1.msra.mxu0 0.0
    %226 = vmatprep.subr.mxu0 0.0
    %227 = vmatpush1.msra.mxu0 0.0
    %228 = vmatprep.subr.mxu0 0.0
    %229 = vmatpush1.msra.mxu0 0.0
    %230 = vmatprep.subr.mxu0 0.0
    %231 = vmatpush1.msra.mxu0 0.0
    %232 = vmatprep.subr.mxu0 0.0
    %233 = vmatpush1.msra.mxu0 0.0
    %234 = vmatprep.mubr.f32.mxu0 0.0
    %235 = vmatmul.mubr.f32.gmra.mrb[0].mxu0 %v97
    %v236 = vpop.f32.mrb[0].mxu0
    %v237 = vadd.f32 %v86, %v236
    %v238 = vpop.f32.mrb[0].mxu0
    %v239 = vadd.f32 %v90, %v238
    %240 = vdwg.mxu0
    %v241 = vmax.f32 %v166, 0.0
    %v242 = vmax.f32 %v168, 0.0
    %v243 = vmax.f32 %v237, 0.0
    %v244 = vmax.f32 %v239, 0.0
    %v245 = vld [vmem:[#allocation7] sm:$0xff]
    %v246 = vld [vmem:[#allocation7 + $0x8] sm:$0xff]
    %v247 = vld [vmem:[#allocation7 + $0x10] sm:$0xff]
    %v248 = vld [vmem:[#allocation7 + $0x18] sm:$0xff]
    %v249 = vld [vmem:[#allocation7 + $0x20] sm:$0xff]
    %v250 = vld [vmem:[#allocation7 + $0x28] sm:$0xff]
    %v251 = vld [vmem:[#allocation7 + $0x30] sm:$0xff]
    %v252 = vld [vmem:[#allocation7 + $0x38] sm:$0xff]
    %v253 = vld [vmem:[#allocation7 + $0x40] sm:$0xff]
    %v254 = vld [vmem:[#allocation7 + $0x48] sm:$0xff]
    %v255 = vld [vmem:[#allocation7 + $0x50] sm:$0xff]
    %v256 = vld [vmem:[#allocation7 + $0x58] sm:$0xff]
    %v257 = vld [vmem:[#allocation7 + $0x60] sm:$0xff]
    %v258 = vld [vmem:[#allocation7 + $0x68] sm:$0xff]
    %v259 = vld [vmem:[#allocation7 + $0x70] sm:$0xff]
    %v260 = vld [vmem:[#allocation7 + $0x78] sm:$0xff]
    %v261 = vld [vmem:[#allocation7 + $0x80] sm:$0xff]
    %v262 = vld [vmem:[#allocation7 + $0x88] sm:$0xff]
    %v263 = vld [vmem:[#allocation7 + $0x90] sm:$0xff]
    %v264 = vld [vmem:[#allocation7 + $0x98] sm:$0xff]
    %v265 = vld [vmem:[#allocation7 + $0xa0] sm:$0xff]
    %v266 = vld [vmem:[#allocation7 + $0xa8] sm:$0xff]
    %v267 = vld [vmem:[#allocation7 + $0xb0] sm:$0xff]
    %v268 = vld [vmem:[#allocation7 + $0xb8] sm:$0xff]
    %v269 = vld [vmem:[#allocation7 + $0xc0] sm:$0xff]
    %v270 = vld [vmem:[#allocation7 + $0xc8] sm:$0xff]
    %v271 = vld [vmem:[#allocation7 + $0xd0] sm:$0xff]
    %v272 = vld [vmem:[#allocation7 + $0xd8] sm:$0xff]
    %v273 = vld [vmem:[#allocation7 + $0xe0] sm:$0xff]
    %v274 = vld [vmem:[#allocation7 + $0xe8] sm:$0xff]
    %v275 = vld [vmem:[#allocation7 + $0xf0] sm:$0xff]
    %v276 = vld [vmem:[#allocation7 + $0xf8] sm:$0xff]
    %v277 = vld [vmem:[#allocation7 + $0x100] sm:$0xff]
    %v278 = vld [vmem:[#allocation7 + $0x108] sm:$0xff]
    %v279 = vld [vmem:[#allocation7 + $0x110] sm:$0xff]
    %v280 = vld [vmem:[#allocation7 + $0x118] sm:$0xff]
    %v281 = vld [vmem:[#allocation7 + $0x120] sm:$0xff]
    %v282 = vld [vmem:[#allocation7 + $0x128] sm:$0xff]
    %v283 = vld [vmem:[#allocation7 + $0x130] sm:$0xff]
    %v284 = vld [vmem:[#allocation7 + $0x138] sm:$0xff]
    %v285 = vld [vmem:[#allocation7 + $0x140] sm:$0xff]
    %v286 = vld [vmem:[#allocation7 + $0x148] sm:$0xff]
    %v287 = vld [vmem:[#allocation7 + $0x150] sm:$0xff]
    %v288 = vld [vmem:[#allocation7 + $0x158] sm:$0xff]
    %v289 = vld [vmem:[#allocation7 + $0x160] sm:$0xff]
    %v290 = vld [vmem:[#allocation7 + $0x168] sm:$0xff]
    %v291 = vld [vmem:[#allocation7 + $0x170] sm:$0xff]
    %v292 = vld [vmem:[#allocation7 + $0x178] sm:$0xff]
    %v293 = vld [vmem:[#allocation7 + $0x180] sm:$0xff]
    %v294 = vld [vmem:[#allocation7 + $0x188] sm:$0xff]
    %v295 = vld [vmem:[#allocation7 + $0x190] sm:$0xff]
    %v296 = vld [vmem:[#allocation7 + $0x198] sm:$0xff]
    %v297 = vld [vmem:[#allocation7 + $0x1a0] sm:$0xff]
    %v298 = vld [vmem:[#allocation7 + $0x1a8] sm:$0xff]
    %v299 = vld [vmem:[#allocation7 + $0x1b0] sm:$0xff]
    %v300 = vld [vmem:[#allocation7 + $0x1b8] sm:$0xff]
    %v301 = vld [vmem:[#allocation7 + $0x1c0] sm:$0xff]
    %v302 = vld [vmem:[#allocation7 + $0x1c8] sm:$0xff]
    %v303 = vld [vmem:[#allocation7 + $0x1d0] sm:$0xff]
    %v304 = vld [vmem:[#allocation7 + $0x1d8] sm:$0xff]
    %v305 = vld [vmem:[#allocation7 + $0x1e0] sm:$0xff]
    %v306 = vld [vmem:[#allocation7 + $0x1e8] sm:$0xff]
    %v307 = vld [vmem:[#allocation7 + $0x1f0] sm:$0xff]
    %v308 = vld [vmem:[#allocation7 + $0x1f8] sm:$0xff]
    %v309 = vld [vmem:[#allocation7 + $0x200] sm:$0xff]
    %v310 = vld [vmem:[#allocation7 + $0x208] sm:$0xff]
    %v311 = vld [vmem:[#allocation7 + $0x210] sm:$0xff]
    %v312 = vld [vmem:[#allocation7 + $0x218] sm:$0xff]
    %v313 = vld [vmem:[#allocation7 + $0x220] sm:$0xff]
    %v314 = vld [vmem:[#allocation7 + $0x228] sm:$0xff]
    %v315 = vld [vmem:[#allocation7 + $0x230] sm:$0xff]
    %v316 = vld [vmem:[#allocation7 + $0x238] sm:$0xff]
    %v317 = vld [vmem:[#allocation7 + $0x240] sm:$0xff]
    %v318 = vld [vmem:[#allocation7 + $0x248] sm:$0xff]
    %v319 = vld [vmem:[#allocation7 + $0x250] sm:$0xff]
    %v320 = vld [vmem:[#allocation7 + $0x258] sm:$0xff]
    %v321 = vld [vmem:[#allocation7 + $0x260] sm:$0xff]
    %v322 = vld [vmem:[#allocation7 + $0x268] sm:$0xff]
    %v323 = vld [vmem:[#allocation7 + $0x270] sm:$0xff]
    %v324 = vld [vmem:[#allocation7 + $0x278] sm:$0xff]
    %v325 = vld [vmem:[#allocation7 + $0x280] sm:$0xff]
    %v326 = vld [vmem:[#allocation7 + $0x288] sm:$0xff]
    %v327 = vld [vmem:[#allocation7 + $0x290] sm:$0xff]
    %v328 = vld [vmem:[#allocation7 + $0x298] sm:$0xff]
    %v329 = vld [vmem:[#allocation7 + $0x2a0] sm:$0xff]
    %v330 = vld [vmem:[#allocation7 + $0x2a8] sm:$0xff]
    %v331 = vld [vmem:[#allocation7 + $0x2b0] sm:$0xff]
    %v332 = vld [vmem:[#allocation7 + $0x2b8] sm:$0xff]
    %v333 = vld [vmem:[#allocation7 + $0x2c0] sm:$0xff]
    %v334 = vld [vmem:[#allocation7 + $0x2c8] sm:$0xff]
    %v335 = vld [vmem:[#allocation7 + $0x2d0] sm:$0xff]
    %v336 = vld [vmem:[#allocation7 + $0x2d8] sm:$0xff]
    %v337 = vld [vmem:[#allocation7 + $0x2e0] sm:$0xff]
    %v338 = vld [vmem:[#allocation7 + $0x2e8] sm:$0xff]
    %v339 = vld [vmem:[#allocation7 + $0x2f0] sm:$0xff]
    %v340 = vld [vmem:[#allocation7 + $0x2f8] sm:$0xff]
    %v341 = vld [vmem:[#allocation7 + $0x300] sm:$0xff]
    %v342 = vld [vmem:[#allocation7 + $0x308] sm:$0xff]
    %v343 = vld [vmem:[#allocation7 + $0x310] sm:$0xff]
    %v344 = vld [vmem:[#allocation7 + $0x318] sm:$0xff]
    %v345 = vld [vmem:[#allocation7 + $0x320] sm:$0xff]
    %v346 = vld [vmem:[#allocation7 + $0x328] sm:$0xff]
    %v347 = vld [vmem:[#allocation7 + $0x330] sm:$0xff]
    %v348 = vld [vmem:[#allocation7 + $0x338] sm:$0xff]
    %v349 = vld [vmem:[#allocation7 + $0x340] sm:$0xff]
    %v350 = vld [vmem:[#allocation7 + $0x348] sm:$0xff]
    %v351 = vld [vmem:[#allocation7 + $0x350] sm:$0xff]
    %v352 = vld [vmem:[#allocation7 + $0x358] sm:$0xff]
    %v353 = vld [vmem:[#allocation7 + $0x360] sm:$0xff]
    %v354 = vld [vmem:[#allocation7 + $0x368] sm:$0xff]
    %v355 = vld [vmem:[#allocation7 + $0x370] sm:$0xff]
    %v356 = vld [vmem:[#allocation7 + $0x378] sm:$0xff]
    %v357 = vld [vmem:[#allocation7 + $0x380] sm:$0xff]
    %v358 = vld [vmem:[#allocation7 + $0x388] sm:$0xff]
    %v359 = vld [vmem:[#allocation7 + $0x390] sm:$0xff]
    %v360 = vld [vmem:[#allocation7 + $0x398] sm:$0xff]
    %v361 = vld [vmem:[#allocation7 + $0x3a0] sm:$0xff]
    %v362 = vld [vmem:[#allocation7 + $0x3a8] sm:$0xff]
    %v363 = vld [vmem:[#allocation7 + $0x3b0] sm:$0xff]
    %v364 = vld [vmem:[#allocation7 + $0x3b8] sm:$0xff]
    %v365 = vld [vmem:[#allocation7 + $0x3c0] sm:$0xff]
    %v366 = vld [vmem:[#allocation7 + $0x3c8] sm:$0xff]
    %v367 = vld [vmem:[#allocation7 + $0x3d0] sm:$0xff]
    %v368 = vld [vmem:[#allocation7 + $0x3d8] sm:$0xff]
    %v369 = vld [vmem:[#allocation7 + $0x3e0] sm:$0xff]
    %v370 = vld [vmem:[#allocation7 + $0x3e8] sm:$0xff]
    %v371 = vld [vmem:[#allocation7 + $0x3f0] sm:$0xff]
    %v372 = vld [vmem:[#allocation7 + $0x3f8] sm:$0xff]
    %v373 = vld [vmem:[#allocation7 + $0x400] sm:$0xff]
    %v374 = vld [vmem:[#allocation7 + $0x408] sm:$0xff]
    %v375 = vld [vmem:[#allocation7 + $0x410] sm:$0xff]
    %v376 = vld [vmem:[#allocation7 + $0x418] sm:$0xff]
    %v377 = vld [vmem:[#allocation7 + $0x420] sm:$0xff]
    %v378 = vld [vmem:[#allocation7 + $0x428] sm:$0xff]
    %v379 = vld [vmem:[#allocation7 + $0x430] sm:$0xff]
    %v380 = vld [vmem:[#allocation7 + $0x438] sm:$0xff]
    %v381 = vld [vmem:[#allocation7 + $0x440] sm:$0xff]
    %v382 = vld [vmem:[#allocation7 + $0x448] sm:$0xff]
    %v383 = vld [vmem:[#allocation7 + $0x450] sm:$0xff]
    %v384 = vld [vmem:[#allocation7 + $0x458] sm:$0xff]
    %v385 = vld [vmem:[#allocation7 + $0x460] sm:$0xff]
    %v386 = vld [vmem:[#allocation7 + $0x468] sm:$0xff]
    %v387 = vld [vmem:[#allocation7 + $0x470] sm:$0xff]
    %v388 = vld [vmem:[#allocation7 + $0x478] sm:$0xff]
    %v389 = vld [vmem:[#allocation7 + $0x480] sm:$0xff]
    %v390 = vld [vmem:[#allocation7 + $0x488] sm:$0xff]
    %v391 = vld [vmem:[#allocation7 + $0x490] sm:$0xff]
    %v392 = vld [vmem:[#allocation7 + $0x498] sm:$0xff]
    %v393 = vld [vmem:[#allocation7 + $0x4a0] sm:$0xff]
    %v394 = vld [vmem:[#allocation7 + $0x4a8] sm:$0xff]
    %v395 = vld [vmem:[#allocation7 + $0x4b0] sm:$0xff]
    %v396 = vld [vmem:[#allocation7 + $0x4b8] sm:$0xff]
    %v397 = vld [vmem:[#allocation7 + $0x4c0] sm:$0xff]
    %v398 = vld [vmem:[#allocation7 + $0x4c8] sm:$0xff]
    %v399 = vld [vmem:[#allocation7 + $0x4d0] sm:$0xff]
    %v400 = vld [vmem:[#allocation7 + $0x4d8] sm:$0xff]
    %v401 = vld [vmem:[#allocation7 + $0x4e0] sm:$0xff]
    %v402 = vld [vmem:[#allocation7 + $0x4e8] sm:$0xff]
    %v403 = vld [vmem:[#allocation7 + $0x4f0] sm:$0xff]
    %v404 = vld [vmem:[#allocation7 + $0x4f8] sm:$0xff]
    %v405 = vld [vmem:[#allocation7 + $0x500] sm:$0xff]
    %v406 = vld [vmem:[#allocation7 + $0x508] sm:$0xff]
    %v407 = vld [vmem:[#allocation7 + $0x510] sm:$0xff]
    %v408 = vld [vmem:[#allocation7 + $0x518] sm:$0xff]
    %v409 = vld [vmem:[#allocation7 + $0x520] sm:$0xff]
    %v410 = vld [vmem:[#allocation7 + $0x528] sm:$0xff]
    %v411 = vld [vmem:[#allocation7 + $0x530] sm:$0xff]
    %v412 = vld [vmem:[#allocation7 + $0x538] sm:$0xff]
    %v413 = vld [vmem:[#allocation7 + $0x540] sm:$0xff]
    %v414 = vld [vmem:[#allocation7 + $0x548] sm:$0xff]
    %v415 = vld [vmem:[#allocation7 + $0x550] sm:$0xff]
    %v416 = vld [vmem:[#allocation7 + $0x558] sm:$0xff]
    %v417 = vld [vmem:[#allocation7 + $0x560] sm:$0xff]
    %v418 = vld [vmem:[#allocation7 + $0x568] sm:$0xff]
    %v419 = vld [vmem:[#allocation7 + $0x570] sm:$0xff]
    %v420 = vld [vmem:[#allocation7 + $0x578] sm:$0xff]
    %v421 = vld [vmem:[#allocation7 + $0x580] sm:$0xff]
    %v422 = vld [vmem:[#allocation7 + $0x588] sm:$0xff]
    %v423 = vld [vmem:[#allocation7 + $0x590] sm:$0xff]
    %v424 = vld [vmem:[#allocation7 + $0x598] sm:$0xff]
    %v425 = vld [vmem:[#allocation7 + $0x5a0] sm:$0xff]
    %v426 = vld [vmem:[#allocation7 + $0x5a8] sm:$0xff]
    %v427 = vld [vmem:[#allocation7 + $0x5b0] sm:$0xff]
    %v428 = vld [vmem:[#allocation7 + $0x5b8] sm:$0xff]
    %v429 = vld [vmem:[#allocation7 + $0x5c0] sm:$0xff]
    %v430 = vld [vmem:[#allocation7 + $0x5c8] sm:$0xff]
    %v431 = vld [vmem:[#allocation7 + $0x5d0] sm:$0xff]
    %v432 = vld [vmem:[#allocation7 + $0x5d8] sm:$0xff]
    %v433 = vld [vmem:[#allocation7 + $0x5e0] sm:$0xff]
    %v434 = vld [vmem:[#allocation7 + $0x5e8] sm:$0xff]
    %v435 = vld [vmem:[#allocation7 + $0x5f0] sm:$0xff]
    %v436 = vld [vmem:[#allocation7 + $0x5f8] sm:$0xff]
    %v437 = vld [vmem:[%s4] sm:$0x7]
    %438 = vset.pattern.permute.xlu0 4
    %439 = vperm.xlu0 %438, %v68
    %v440 = vpop.permute.xlu0 %439
    %v443 = vlaneseq
    %v444 = vshrl.u32 %v443, 7
    %v445 = vsub.s32 0, %v444
    %v446 = vrot.slane %v437, %v445
    %v447 = vlaneseq
    %v448 = vshrl.u32 %v447, 7
    %v449 = vsub.s32 1, %v448
    %v450 = vrot.slane %v437, %v449
    %v451 = vlaneseq
    %v452 = vshrl.u32 %v451, 7
    %v453 = vsub.s32 2, %v452
    %v454 = vrot.slane %v437, %v453
    %v458 = vmul.f32 %v440, %v446
    %v459 = vmul.f32 %v440, %v450
    %v460 = vmul.f32 %v440, %v454
    %461 = vmatprep.subr.mxu0 %v246
    %462 = vmatpush1.msra.mxu0 %v245
    %463 = vmatprep.subr.mxu0 %v249
    %464 = vmatpush1.msra.mxu0 %v248
    %465 = vmatprep.subr.mxu0 %v252
    %466 = vmatpush1.msra.mxu0 %v251
    %467 = vmatprep.subr.mxu0 %v255
    %468 = vmatpush1.msra.mxu0 %v254
    %469 = vmatprep.subr.mxu0 %v258
    %470 = vmatpush1.msra.mxu0 %v257
    %471 = vmatprep.subr.mxu0 %v261
    %472 = vmatpush1.msra.mxu0 %v260
    %473 = vmatprep.subr.mxu0 %v264
    %474 = vmatpush1.msra.mxu0 %v263
    %475 = vmatprep.subr.mxu0 %v267
    %476 = vmatpush1.msra.mxu0 %v266
    %477 = vmatprep.subr.mxu0 %v270
    %478 = vmatpush1.msra.mxu0 %v269
    %479 = vmatprep.subr.mxu0 %v273
    %480 = vmatpush1.msra.mxu0 %v272
    %481 = vmatprep.subr.mxu0 %v276
    %482 = vmatpush1.msra.mxu0 %v275
    %483 = vmatprep.subr.mxu0 %v279
    %484 = vmatpush1.msra.mxu0 %v278
    %485 = vmatprep.subr.mxu0 %v282
    %486 = vmatpush1.msra.mxu0 %v281
    %487 = vmatprep.subr.mxu0 %v285
    %488 = vmatpush1.msra.mxu0 %v284
    %489 = vmatprep.subr.mxu0 %v288
    %490 = vmatpush1.msra.mxu0 %v287
    %491 = vmatprep.subr.mxu0 %v291
    %492 = vmatpush1.msra.mxu0 %v290
    %493 = vmatprep.subr.mxu0 %v294
    %494 = vmatpush1.msra.mxu0 %v293
    %495 = vmatprep.subr.mxu0 %v297
    %496 = vmatpush1.msra.mxu0 %v296
    %497 = vmatprep.subr.mxu0 %v300
    %498 = vmatpush1.msra.mxu0 %v299
    %499 = vmatprep.subr.mxu0 %v303
    %500 = vmatpush1.msra.mxu0 %v302
    %501 = vmatprep.subr.mxu0 %v306
    %502 = vmatpush1.msra.mxu0 %v305
    %503 = vmatprep.subr.mxu0 %v309
    %504 = vmatpush1.msra.mxu0 %v308
    %505 = vmatprep.subr.mxu0 %v312
    %506 = vmatpush1.msra.mxu0 %v311
    %507 = vmatprep.subr.mxu0 %v315
    %508 = vmatpush1.msra.mxu0 %v314
    %509 = vmatprep.subr.mxu0 %v318
    %510 = vmatpush1.msra.mxu0 %v317
    %511 = vmatprep.subr.mxu0 %v321
    %512 = vmatpush1.msra.mxu0 %v320
    %513 = vmatprep.subr.mxu0 %v324
    %514 = vmatpush1.msra.mxu0 %v323
    %515 = vmatprep.subr.mxu0 %v327
    %516 = vmatpush1.msra.mxu0 %v326
    %517 = vmatprep.subr.mxu0 %v330
    %518 = vmatpush1.msra.mxu0 %v329
    %519 = vmatprep.subr.mxu0 %v333
    %520 = vmatpush1.msra.mxu0 %v332
    %521 = vmatprep.subr.mxu0 %v336
    %522 = vmatpush1.msra.mxu0 %v335
    %523 = vmatprep.subr.mxu0 %v339
    %524 = vmatpush1.msra.mxu0 %v338
    %525 = vmatprep.mubr.f32.mxu0 %v242
    %526 = vmatmul.mubr.f32.gmra.mrb[0].mxu0 %v241
    %v527 = vpop.f32.mrb[0].mxu0
    %v528 = vadd.f32 %v458, %v527
    %v529 = vpop.f32.mrb[0].mxu0
    %v530 = vadd.f32 %v459, %v529
    %531 = vdwg.mxu0
    %532 = vmatprep.subr.mxu0 %v342
    %533 = vmatpush1.msra.mxu0 %v341
    %534 = vmatprep.subr.mxu0 %v345
    %535 = vmatpush1.msra.mxu0 %v344
    %536 = vmatprep.subr.mxu0 %v348
    %537 = vmatpush1.msra.mxu0 %v347
    %538 = vmatprep.subr.mxu0 %v351
    %539 = vmatpush1.msra.mxu0 %v350
    %540 = vmatprep.subr.mxu0 %v354
    %541 = vmatpush1.msra.mxu0 %v353
    %542 = vmatprep.subr.mxu0 %v357
    %543 = vmatpush1.msra.mxu0 %v356
    %544 = vmatprep.subr.mxu0 %v360
    %545 = vmatpush1.msra.mxu0 %v359
    %546 = vmatprep.subr.mxu0 %v363
    %547 = vmatpush1.msra.mxu0 %v362
    %548 = vmatprep.subr.mxu0 %v366
    %549 = vmatpush1.msra.mxu0 %v365
    %550 = vmatprep.subr.mxu0 %v369
    %551 = vmatpush1.msra.mxu0 %v368
    %552 = vmatprep.subr.mxu0 %v372
    %553 = vmatpush1.msra.mxu0 %v371
    %554 = vmatprep.subr.mxu0 %v375
    %555 = vmatpush1.msra.mxu0 %v374
    %556 = vmatprep.subr.mxu0 %v378
    %557 = vmatpush1.msra.mxu0 %v377
    %558 = vmatprep.subr.mxu0 %v381
    %559 = vmatpush1.msra.mxu0 %v380
    %560 = vmatprep.subr.mxu0 %v384
    %561 = vmatpush1.msra.mxu0 %v383
    %562 = vmatprep.subr.mxu0 %v387
    %563 = vmatpush1.msra.mxu0 %v386
    %564 = vmatprep.subr.mxu0 %v390
    %565 = vmatpush1.msra.mxu0 %v389
    %566 = vmatprep.subr.mxu0 %v393
    %567 = vmatpush1.msra.mxu0 %v392
    %568 = vmatprep.subr.mxu0 %v396
    %569 = vmatpush1.msra.mxu0 %v395
    %570 = vmatprep.subr.mxu0 %v399
    %571 = vmatpush1.msra.mxu0 %v398
    %572 = vmatprep.subr.mxu0 %v402
    %573 = vmatpush1.msra.mxu0 %v401
    %574 = vmatprep.subr.mxu0 %v405
    %575 = vmatpush1.msra.mxu0 %v404
    %576 = vmatprep.subr.mxu0 %v408
    %577 = vmatpush1.msra.mxu0 %v407
    %578 = vmatprep.subr.mxu0 %v411
    %579 = vmatpush1.msra.mxu0 %v410
    %580 = vmatprep.subr.mxu0 %v414
    %581 = vmatpush1.msra.mxu0 %v413
    %582 = vmatprep.subr.mxu0 %v417
    %583 = vmatpush1.msra.mxu0 %v416
    %584 = vmatprep.subr.mxu0 %v420
    %585 = vmatpush1.msra.mxu0 %v419
    %586 = vmatprep.subr.mxu0 %v423
    %587 = vmatpush1.msra.mxu0 %v422
    %588 = vmatprep.subr.mxu0 %v426
    %589 = vmatpush1.msra.mxu0 %v425
    %590 = vmatprep.subr.mxu0 %v429
    %591 = vmatpush1.msra.mxu0 %v428
    %592 = vmatprep.subr.mxu0 %v432
    %593 = vmatpush1.msra.mxu0 %v431
    %594 = vmatprep.subr.mxu0 %v435
    %595 = vmatpush1.msra.mxu0 %v434
    %596 = vmatprep.mubr.f32.mxu0 %v244
    %597 = vmatmul.mubr.f32.gmra.mrb[0].mxu0 %v243
    %v598 = vpop.f32.mrb[0].mxu0
    %v599 = vadd.f32 %v528, %v598
    %v600 = vpop.f32.mrb[0].mxu0
    %v601 = vadd.f32 %v530, %v600
    %602 = vdwg.mxu0
    %603 = vmatprep.subr.mxu0 0.0
    %604 = vmatpush1.msra.mxu0 %v247
    %605 = vmatprep.subr.mxu0 0.0
    %606 = vmatpush1.msra.mxu0 %v250
    %607 = vmatprep.subr.mxu0 0.0
    %608 = vmatpush1.msra.mxu0 %v253
    %609 = vmatprep.subr.mxu0 0.0
    %610 = vmatpush1.msra.mxu0 %v256
    %611 = vmatprep.subr.mxu0 0.0
    %612 = vmatpush1.msra.mxu0 %v259
    %613 = vmatprep.subr.mxu0 0.0
    %614 = vmatpush1.msra.mxu0 %v262
    %615 = vmatprep.subr.mxu0 0.0
    %616 = vmatpush1.msra.mxu0 %v265
    %617 = vmatprep.subr.mxu0 0.0
    %618 = vmatpush1.msra.mxu0 %v268
    %619 = vmatprep.subr.mxu0 0.0
    %620 = vmatpush1.msra.mxu0 %v271
    %621 = vmatprep.subr.mxu0 0.0
    %622 = vmatpush1.msra.mxu0 %v274
    %623 = vmatprep.subr.mxu0 0.0
    %624 = vmatpush1.msra.mxu0 %v277
    %625 = vmatprep.subr.mxu0 0.0
    %626 = vmatpush1.msra.mxu0 %v280
    %627 = vmatprep.subr.mxu0 0.0
    %628 = vmatpush1.msra.mxu0 %v283
    %629 = vmatprep.subr.mxu0 0.0
    %630 = vmatpush1.msra.mxu0 %v286
    %631 = vmatprep.subr.mxu0 0.0
    %632 = vmatpush1.msra.mxu0 %v289
    %633 = vmatprep.subr.mxu0 0.0
    %634 = vmatpush1.msra.mxu0 %v292
    %635 = vmatprep.subr.mxu0 0.0
    %636 = vmatpush1.msra.mxu0 %v295
    %637 = vmatprep.subr.mxu0 0.0
    %638 = vmatpush1.msra.mxu0 %v298
    %639 = vmatprep.subr.mxu0 0.0
    %640 = vmatpush1.msra.mxu0 %v301
    %641 = vmatprep.subr.mxu0 0.0
    %642 = vmatpush1.msra.mxu0 %v304
    %643 = vmatprep.subr.mxu0 0.0
    %644 = vmatpush1.msra.mxu0 %v307
    %645 = vmatprep.subr.mxu0 0.0
    %646 = vmatpush1.msra.mxu0 %v310
    %647 = vmatprep.subr.mxu0 0.0
    %648 = vmatpush1.msra.mxu0 %v313
    %649 = vmatprep.subr.mxu0 0.0
    %650 = vmatpush1.msra.mxu0 %v316
    %651 = vmatprep.subr.mxu0 0.0
    %652 = vmatpush1.msra.mxu0 %v319
    %653 = vmatprep.subr.mxu0 0.0
    %654 = vmatpush1.msra.mxu0 %v322
    %655 = vmatprep.subr.mxu0 0.0
    %656 = vmatpush1.msra.mxu0 %v325
    %657 = vmatprep.subr.mxu0 0.0
    %658 = vmatpush1.msra.mxu0 %v328
    %659 = vmatprep.subr.mxu0 0.0
    %660 = vmatpush1.msra.mxu0 %v331
    %661 = vmatprep.subr.mxu0 0.0
    %662 = vmatpush1.msra.mxu0 %v334
    %663 = vmatprep.subr.mxu0 0.0
    %664 = vmatpush1.msra.mxu0 %v337
    %665 = vmatprep.subr.mxu0 0.0
    %666 = vmatpush1.msra.mxu0 %v340
    %667 = vmatprep.mubr.f32.mxu0 %v242
    %668 = vmatmul.mubr.f32.gmra.mrb[0].mxu0 %v241
    %v669 = vpop.f32.mrb[0].mxu0
    %v670 = vadd.f32 %v460, %v669
    %v671 = vpop.f32.mrb[0].mxu0
    %672 = vdwg.mxu0
    %673 = vmatprep.subr.mxu0 0.0
    %674 = vmatpush1.msra.mxu0 %v343
    %675 = vmatprep.subr.mxu0 0.0
    %676 = vmatpush1.msra.mxu0 %v346
    %677 = vmatprep.subr.mxu0 0.0
    %678 = vmatpush1.msra.mxu0 %v349
    %679 = vmatprep.subr.mxu0 0.0
    %680 = vmatpush1.msra.mxu0 %v352
    %681 = vmatprep.subr.mxu0 0.0
    %682 = vmatpush1.msra.mxu0 %v355
    %683 = vmatprep.subr.mxu0 0.0
    %684 = vmatpush1.msra.mxu0 %v358
    %685 = vmatprep.subr.mxu0 0.0
    %686 = vmatpush1.msra.mxu0 %v361
    %687 = vmatprep.subr.mxu0 0.0
    %688 = vmatpush1.msra.mxu0 %v364
    %689 = vmatprep.subr.mxu0 0.0
    %690 = vmatpush1.msra.mxu0 %v367
    %691 = vmatprep.subr.mxu0 0.0
    %692 = vmatpush1.msra.mxu0 %v370
    %693 = vmatprep.subr.mxu0 0.0
    %694 = vmatpush1.msra.mxu0 %v373
    %695 = vmatprep.subr.mxu0 0.0
    %696 = vmatpush1.msra.mxu0 %v376
    %697 = vmatprep.subr.mxu0 0.0
    %698 = vmatpush1.msra.mxu0 %v379
    %699 = vmatprep.subr.mxu0 0.0
    %700 = vmatpush1.msra.mxu0 %v382
    %701 = vmatprep.subr.mxu0 0.0
    %702 = vmatpush1.msra.mxu0 %v385
    %703 = vmatprep.subr.mxu0 0.0
    %704 = vmatpush1.msra.mxu0 %v388
    %705 = vmatprep.subr.mxu0 0.0
    %706 = vmatpush1.msra.mxu0 %v391
    %707 = vmatprep.subr.mxu0 0.0
    %708 = vmatpush1.msra.mxu0 %v394
    %709 = vmatprep.subr.mxu0 0.0
    %710 = vmatpush1.msra.mxu0 %v397
    %711 = vmatprep.subr.mxu0 0.0
    %712 = vmatpush1.msra.mxu0 %v400
    %713 = vmatprep.subr.mxu0 0.0
    %714 = vmatpush1.msra.mxu0 %v403
    %715 = vmatprep.subr.mxu0 0.0
    %716 = vmatpush1.msra.mxu0 %v406
    %717 = vmatprep.subr.mxu0 0.0
    %718 = vmatpush1.msra.mxu0 %v409
    %719 = vmatprep.subr.mxu0 0.0
    %720 = vmatpush1.msra.mxu0 %v412
    %721 = vmatprep.subr.mxu0 0.0
    %722 = vmatpush1.msra.mxu0 %v415
    %723 = vmatprep.subr.mxu0 0.0
    %724 = vmatpush1.msra.mxu0 %v418
    %725 = vmatprep.subr.mxu0 0.0
    %726 = vmatpush1.msra.mxu0 %v421
    %727 = vmatprep.subr.mxu0 0.0
    %728 = vmatpush1.msra.mxu0 %v424
    %729 = vmatprep.subr.mxu0 0.0
    %730 = vmatpush1.msra.mxu0 %v427
    %731 = vmatprep.subr.mxu0 0.0
    %732 = vmatpush1.msra.mxu0 %v430
    %733 = vmatprep.subr.mxu0 0.0
    %734 = vmatpush1.msra.mxu0 %v433
    %735 = vmatprep.subr.mxu0 0.0
    %736 = vmatpush1.msra.mxu0 %v436
    %737 = vmatprep.mubr.f32.mxu0 %v244
    %738 = vmatmul.mubr.f32.gmra.mrb[0].mxu0 %v243
    %v739 = vpop.f32.mrb[0].mxu0
    %v740 = vadd.f32 %v670, %v739
    %v741 = vpop.f32.mrb[0].mxu0
    %742 = vdwg.mxu0
    %v743 = vld [vmem:[%s5] sm:$0x7]
    %v745 = vlaneseq
    %v746 = vshrl.u32 %v745, 7
    %v747 = vsub.s32 0, %v746
    %v748 = vrot.slane %v743, %v747
    %v749 = vlaneseq
    %v750 = vshrl.u32 %v749, 7
    %v751 = vsub.s32 1, %v750
    %v752 = vrot.slane %v743, %v751
    %v753 = vlaneseq
    %v754 = vshrl.u32 %v753, 7
    %v755 = vsub.s32 2, %v754
    %v756 = vrot.slane %v743, %v755
    %v760 = vadd.f32 %v599, %v748
    %v761 = vadd.f32 %v601, %v752
    %v762 = vadd.f32 %v740, %v756
    %v763 = vmax.f32 %v760, 0.0
    %v764 = vmax.f32 %v761, 0.0
    %v765 = vmax.f32 %v762, 0.0
    %v766 = vld [vmem:[%s6] sm:$0x7]
    %v768 = vlaneseq
    %v769 = vshrl.u32 %v768, 7
    %v770 = vsub.s32 0, %v769
    %v771 = vrot.slane %v766, %v770
    %v772 = vlaneseq
    %v773 = vshrl.u32 %v772, 7
    %v774 = vsub.s32 1, %v773
    %v775 = vrot.slane %v766, %v774
    %v776 = vlaneseq
    %v777 = vshrl.u32 %v776, 7
    %v778 = vsub.s32 2, %v777
    %v779 = vrot.slane %v766, %v778
    %v783 = vmul.f32 %v763, %v771
    %v784 = vmul.f32 %v764, %v775
    %v785 = vmul.f32 %v765, %v779
    %v786 = vadd.f32 %v783, %v784
    %v787 = vadd.f32 %v786, %v785
    %788 = vadd.xlane.f32.xlu0 %v787
    %v789 = vpop.xlane.xlu0 %788
    %v790 = vld [vmem:[#allocation2] sm:$0x1]
    %v792 = vlaneseq
    %v793 = vshrl.u32 %v792, 7
    %v794 = vsub.s32 0, %v793
    %v795 = vrot.slane %v790, %v794
    %v797 = vadd.f32 %v789, %v795
    %vm798 = vcmask 7168
    %799 = vst.msk [vmem:[%s8] sm:$0xff] %vm798, %v797
    // Predicated region
    $region46: #{tpu_custom_call.1} parent=1 // pred_check
      _
    $region47: #{tpu_custom_call.1} parent=1 // pred_check_branch
      %801 = sbr.rel (0) target = $region49
    $region48: #{tpu_custom_call.1} parent=1 // pred_region
      _
    $region49: #{tpu_custom_call.1} parent=1 // pred_fallthru
      _
    // Predicated region
    $region50: #{tpu_custom_call.1} parent=1 // pred_check
      _
    $region51: #{tpu_custom_call.1} parent=1 // pred_check_branch
      %803 = sbr.rel (0) target = $region53
    $region52: #{tpu_custom_call.1} parent=1 // pred_region
      _
    $region53: #{tpu_custom_call.1} parent=1 // pred_fallthru
      _
    %804 = vsyncpa [#allocation4], 1
    %805 = vsyncpa [#allocation6], 1

</llo_original>
